<compile_context>
chip_gen: v7x
topology: tpu7x:2x2x1
jax: 0.10.0
libtpu: 0.0.40
codegen_flags: <defaults>
</compile_context>

<pallas_src>
from functools import partial
from itertools import combinations

import numpy as np
import jax
import jax.numpy as jnp
from jax.experimental import pallas as pl
from jax.experimental.pallas import tpu as pltpu

NJOINTS = 21
NPARTS = 20
N_VIRTUAL_VIEWS = 20
NVIEWS = N_VIRTUAL_VIEWS + 1          # 21 (camera vector + virtual views)
PARENTS = np.array([0, 0, 1, 2, 3, 0, 5, 6, 7, 0, 9, 10, 11, 0, 13, 14, 15, 0, 17, 18, 19])
JOINT_PAIRS = np.array(list(combinations(range(NJOINTS), 2)))   # (210, 2)
PART_PAIRS = np.array(list(combinations(range(NPARTS), 2)))     # (190, 2)

# TODO(synk): PyTorch re-shuffles the pair subset with host-side random.shuffle
# on every forward; here the subset is a fixed (seed-0) permutation so indices
# and shapes stay static under jit.
_rng = np.random.default_rng(0)
J_SEL = np.sort(_rng.permutation(len(JOINT_PAIRS))[: len(JOINT_PAIRS) // 3])   # 70 pairs
P_SEL = np.sort(_rng.permutation(len(PART_PAIRS))[: len(PART_PAIRS) // 3])     # 63 pairs
JP1, JP2 = JOINT_PAIRS[J_SEL, 0], JOINT_PAIRS[J_SEL, 1]
PP1, PP2 = PART_PAIRS[P_SEL, 0], PART_PAIRS[P_SEL, 1]
N_JSEL = len(J_SEL)
N_PSEL = len(P_SEL)

K_PAD = 8                  # pad the 3-dim coordinate axis (matmul K) to 8
V_PAD = 24                 # pad the 21 views to a sublane multiple of 8
BLOCK_COLS_MAX = 16384     # lane-axis block size (columns) per grid step
N_OUTER = 2                # leading "parallel" axis -> 2 TensorCores on v7x


def _pad_to(n, m):
    return ((n + m - 1) // m) * m


# ----------------------------------------------------------------------------
# Kernel (module-level; per-call constants bound via functools.partial).
# ----------------------------------------------------------------------------
def _hand_ord_loss_kernel(vv_ref, p_ref, g_ref, out_ref, *, nbj, w_joint, w_part):
    """One grid step over one column block (purely joint OR purely part).

    vv_ref : (V_PAD, K_PAD) view vectors (rows >= NVIEWS and cols >= 3 are 0).
    p_ref  : (K_PAD, bc) predicted pair 3-vectors as columns (zero padded).
    g_ref  : (K_PAD, bc) ground-truth pair 3-vectors as columns (zero padded).
    out_ref: (1, bc) per-lane partial-loss accumulator; its block index only
             depends on the outer (parallel) axis, so it stays resident across
             the inner "arbitrary" axis and acts as the accumulator.
    Static : nbj    -- flattened block index < nbj means "joint" block,
             w_joint / w_part -- 1/N mean weights (padding contributes 0).
    """
    i = pl.program_id(1)
    blk = pl.program_id(0) * pl.num_programs(1) + i      # flattened block index

    @pl.when(i == 0)
    def _init():
        out_ref[...] = jnp.zeros_like(out_ref)

    # Two small MXU dots: (24, 8) @ (8, bc) -> (24, bc), lane-dense.
    pv = jnp.dot(vv_ref[...], p_ref[...], preferred_element_type=jnp.float32)
    gv = jnp.dot(vv_ref[...], g_ref[...], preferred_element_type=jnp.float32)

    # relu(-sign(gt) * pred) == |pred| where gt*pred < 0, else 0.
    # (Product may underflow for extremely tiny magnitudes -> drops negligibly
    #  small contributions; fine at realistic joint scales.)
    v = jnp.where(gv * pv < 0.0, jnp.abs(pv), 0.0)

    # Sublane (view) reduce first, then the scalar 1/N weight.  log is only
    # evaluated on joint blocks (EUP skipped entirely on part blocks).
    @pl.when(blk < nbj)
    def _joint():
        out_ref[...] += jnp.sum(jnp.log(1.0 + v), axis=0, keepdims=True) * w_joint

    @pl.when(blk >= nbj)
    def _part():
        out_ref[...] += jnp.sum(v, axis=0, keepdims=True) * w_part


# ----------------------------------------------------------------------------
# JAX glue (runs inside the same jit; fused by XLA).
# ----------------------------------------------------------------------------
def _sample_view_vectors(key):
    """JAX equivalent of sample_view_vectors (torch.rand -> jax.random)."""
    k1, k2 = jax.random.split(key)
    theta = jax.random.uniform(k1, (N_VIRTUAL_VIEWS,), dtype=jnp.float32) * 2.0 * np.pi
    u = jax.random.uniform(k2, (N_VIRTUAL_VIEWS,), dtype=jnp.float32)
    nv_x = jnp.sqrt(1.0 - u ** 2) * jnp.cos(theta)
    nv_y = jnp.sqrt(1.0 - u ** 2) * jnp.sin(theta)
    nv_z = u
    nv = jnp.stack([nv_x, nv_y, nv_z], axis=1)
    cam = jnp.array([[0.0, 0.0, 1.0]], dtype=jnp.float32)
    return jnp.concatenate([cam, nv], axis=0)                          # (21, 3)


def _joint_cols(jt):
    """(3, B, 21) K-major joints -> (3, B*N_JSEL) joint-pair differences."""
    return (jt[:, :, JP1] - jt[:, :, JP2]).reshape(3, -1)


def _part_cols(jt):
    """(3, B, 21) K-major joints -> (3, B*N_PSEL) part-pair cross products."""
    parts = (jt - jt[:, :, PARENTS])[:, :, 1:]          # (3, B, 20)
    a = parts[:, :, PP1]                                # (3, B, N_PSEL)
    b = parts[:, :, PP2]
    cx = a[1] * b[2] - a[2] * b[1]
    cy = a[2] * b[0] - a[0] * b[2]
    cz = a[0] * b[1] - a[1] * b[0]
    return jnp.stack([cx, cy, cz], axis=0).reshape(3, -1)


def _hand_ord_loss(pred_joints, gt_joints, key):
    B = pred_joints.shape[0]
    pred_joints = pred_joints.astype(jnp.float32)
    gt_joints = gt_joints.astype(jnp.float32)

    view_vecs = _sample_view_vectors(key)                              # (21, 3)
    vv = jnp.pad(view_vecs, ((0, V_PAD - NVIEWS), (0, K_PAD - 3)))     # (24, 8)

    nj = B * N_JSEL            # real joint-pair columns (per view)
    npp = B * N_PSEL           # real part-pair columns (per view)
    bc = min(BLOCK_COLS_MAX, _pad_to(max(nj, npp), 128))   # lane block (x128)
    nbj = -(-nj // bc)                                     # joint blocks
    nbp = -(-npp // bc)                                    # part blocks
    nblocks = _pad_to(nbj + nbp, N_OUTER)                  # pad for 2-way split
    inner = nblocks // N_OUTER
    cj = nbj * bc
    c_total = nblocks * bc

    # K-major pair features: one transpose of the tiny (B, 21, 3) joints, all
    # subsequent pair diffs / crosses stay K-major (no medium transposes).
    def assemble(joints):
        jt = jnp.transpose(joints, (2, 0, 1))            # (3, B, 21)
        jc = _joint_cols(jt)                             # (3, nj)
        pc = _part_cols(jt)                              # (3, npp)
        cols = jnp.concatenate(
            [jnp.pad(jc, ((0, 0), (0, cj - nj))),
             jnp.pad(pc, ((0, 0), (0, c_total - cj - npp)))], axis=1)
        return jnp.pad(cols, ((0, K_PAD - 3), (0, 0)))   # (K_PAD, c_total)

    p_cols = assemble(pred_joints)
    g_cols = assemble(gt_joints)

    kernel = partial(_hand_ord_loss_kernel, nbj=nbj,
                     w_joint=1.0 / (nj * NVIEWS), w_part=1.0 / (npp * NVIEWS))

    partials = pl.pallas_call(
        kernel,
        out_shape=jax.ShapeDtypeStruct((N_OUTER, 1, bc), jnp.float32),
        grid_spec=pltpu.PrefetchScalarGridSpec(
            num_scalar_prefetch=0,
            grid=(N_OUTER, inner),
            in_specs=[
                pl.BlockSpec((V_PAD, K_PAD), lambda c, i: (0, 0)),            # views (resident)
                pl.BlockSpec((K_PAD, bc), lambda c, i: (0, c * inner + i)),   # pred columns
                pl.BlockSpec((K_PAD, bc), lambda c, i: (0, c * inner + i)),   # gt columns
            ],
            out_specs=pl.BlockSpec((None, 1, bc), lambda c, i: (c, 0, 0)),
        ),
        compiler_params=pltpu.CompilerParams(
            dimension_semantics=("parallel", "arbitrary"),
            vmem_limit_bytes=32 * 1024 * 1024),
    )(vv, p_cols, g_cols)

    # Tiny final cross-lane reduce over the (2, 1, bc) partials (done by XLA).
    return jnp.sum(partials)


hand_ord_loss = jax.jit(_hand_ord_loss)


@jax.jit
def hand_ord_loss_ref(pred_joints, gt_joints, key):
    """Pure-JAX reference (no padding, no Pallas) for correctness checking."""
    pred_joints = pred_joints.astype(jnp.float32)
    gt_joints = gt_joints.astype(jnp.float32)
    view = _sample_view_vectors(key)                                   # (21, 3)

    pjd = pred_joints[:, JP1, :] - pred_joints[:, JP2, :]
    gjd = gt_joints[:, JP1, :] - gt_joints[:, JP2, :]
    pred_j = jnp.einsum('bpk,vk->bpv', pjd, view)
    gt_j = jnp.einsum('bpk,vk->bpv', gjd, view)
    lj = jnp.log(1.0 + jax.nn.relu(-jnp.sign(gt_j) * pred_j))

    def parts_cross(joints):
        parts = (joints - joints[:, PARENTS, :])[:, 1:, :]
        return jnp.cross(parts[:, PP1, :], parts[:, PP2, :])

    ppc = parts_cross(pred_joints)
    gpc = parts_cross(gt_joints)
    pred_p = jnp.einsum('bpk,vk->bpv', ppc, view)
    gt_p = jnp.einsum('bpk,vk->bpv', gpc, view)
    lp = jax.nn.relu(-jnp.sign(gt_p) * pred_p)

    return jnp.mean(lj) + jnp.mean(lp)


if __name__ == "__main__":
    key = jax.random.PRNGKey(0)
    kp, kg, kv = jax.random.split(key, 3)
    B = 2
    pred_joints = jax.random.normal(kp, (B, NJOINTS, 3), dtype=jnp.float32) * 0.1
    gt_joints = jax.random.normal(kg, (B, NJOINTS, 3), dtype=jnp.float32) * 0.1

    loss = jax.block_until_ready(hand_ord_loss(pred_joints, gt_joints, kv))
    ref = jax.block_until_ready(hand_ord_loss_ref(pred_joints, gt_joints, kv))

    assert jnp.isfinite(loss), loss
    assert jnp.allclose(loss, ref, rtol=1e-3, atol=1e-5), (loss, ref)
    print("KERNEL_OK")
</pallas_src>

<mosaic_0001>
module attributes {stable_mosaic.version = 11 : i64} {
  func.func @_hand_ord_loss_kernel(%arg0: i32, %arg1: i32, %arg2: memref<24x8xf32, #tpu.memory_space<vmem>>, %arg3: memref<8x256xf32, #tpu.memory_space<vmem>>, %arg4: memref<8x256xf32, #tpu.memory_space<vmem>>, %arg5: memref<1x1x256xf32, #tpu.memory_space<vmem>>) attributes {dimension_semantics = [#tpu.dimension_semantics<parallel>, #tpu.dimension_semantics<arbitrary>], iteration_bounds = array<i64: 2, 1>, scalar_prefetch = 0 : i64, scratch_operands = 0 : i64, tpu.core_type = #tpu.core_type<tc>, window_params = [{pipeline_mode = #tpu.pipeline_mode<synchronous>, transform_indices = @transform_0, window_bounds = array<i64: 24, 8>}, {transform_indices = @transform_1, window_bounds = array<i64: 8, 256>}, {transform_indices = @transform_2, window_bounds = array<i64: 8, 256>}, {transform_indices = @transform_3, window_bounds = array<i64: 1, 1, 256>}]} {
    %c1_i32 = arith.constant 1 : i32
    %0 = arith.muli %arg0, %c1_i32 : i32
    %1 = arith.addi %0, %arg1 : i32
    %c0_i32 = arith.constant 0 : i32
    %2 = arith.cmpi eq, %arg1, %c0_i32 : i32
    %3 = arith.extui %2 : i1 to i32
    %c0_i32_0 = arith.constant 0 : i32
    %4 = arith.cmpi ne, %3, %c0_i32_0 : i32
    scf.if %4 {
      %cst_15 = arith.constant 0.000000e+00 : f32
      %23 = vector.broadcast %cst_15 : f32 to vector<1x256xf32>
      %c0_16 = arith.constant 0 : index
      %c0_17 = arith.constant 0 : index
      %c0_18 = arith.constant 0 : index
      %24 = vector.load %arg5[%c0_16, %c0_17, %c0_18] : memref<1x1x256xf32, #tpu.memory_space<vmem>>, vector<1x1x256xf32>
      %25 = vector.shape_cast %24 : vector<1x1x256xf32> to vector<1x256xf32>
      %26 = vector.shape_cast %23 : vector<1x256xf32> to vector<1x1x256xf32>
      tpu.vector_store %arg5[%c0_16, %c0_17, %c0_18], %26 {strides = array<i32>} : memref<1x1x256xf32, #tpu.memory_space<vmem>>, vector<1x1x256xf32>,
    } else {
    }
    %c0 = arith.constant 0 : index
    %c0_1 = arith.constant 0 : index
    %5 = vector.load %arg2[%c0, %c0_1] : memref<24x8xf32, #tpu.memory_space<vmem>>, vector<24x8xf32>
    %c0_2 = arith.constant 0 : index
    %c0_3 = arith.constant 0 : index
    %6 = vector.load %arg3[%c0_2, %c0_3] : memref<8x256xf32, #tpu.memory_space<vmem>>, vector<8x256xf32>
    %cst = arith.constant dense<0.000000e+00> : vector<24x256xf32>
    %7 = tpu.matmul %5, %6, %cst {dimension_numbers = #tpu.dot_dimension_numbers<[1], [0], [0], [1], [0, 0, 1, 1], [], []>} : vector<24x8xf32>, vector<8x256xf32>, vector<24x256xf32> -> vector<24x256xf32>
    %c0_4 = arith.constant 0 : index
    %c0_5 = arith.constant 0 : index
    %8 = vector.load %arg2[%c0_4, %c0_5] : memref<24x8xf32, #tpu.memory_space<vmem>>, vector<24x8xf32>
    %c0_6 = arith.constant 0 : index
    %c0_7 = arith.constant 0 : index
    %9 = vector.load %arg4[%c0_6, %c0_7] : memref<8x256xf32, #tpu.memory_space<vmem>>, vector<8x256xf32>
    %cst_8 = arith.constant dense<0.000000e+00> : vector<24x256xf32>
    %10 = tpu.matmul %8, %9, %cst_8 {dimension_numbers = #tpu.dot_dimension_numbers<[1], [0], [0], [1], [0, 0, 1, 1], [], []>} : vector<24x8xf32>, vector<8x256xf32>, vector<24x256xf32> -> vector<24x256xf32>
    %11 = arith.mulf %10, %7 : vector<24x256xf32>
    %cst_9 = arith.constant 0.000000e+00 : f32
    %12 = vector.broadcast %cst_9 : f32 to vector<24x256xf32>
    %13 = arith.cmpf olt, %11, %12 : vector<24x256xf32>
    %14 = math.absf %7 : vector<24x256xf32>
    %cst_10 = arith.constant 0.000000e+00 : f32
    %15 = vector.broadcast %cst_10 : f32 to vector<24x256xf32>
    %16 = arith.select %13, %14, %15 : vector<24x256xi1>, vector<24x256xf32>
    %c1_i32_11 = arith.constant 1 : i32
    %17 = arith.cmpi slt, %1, %c1_i32_11 : i32
    %18 = arith.extui %17 : i1 to i32
    %c0_i32_12 = arith.constant 0 : i32
    %19 = arith.cmpi ne, %18, %c0_i32_12 : i32
    scf.if %19 {
      %c0_15 = arith.constant 0 : index
      %c0_16 = arith.constant 0 : index
      %c0_17 = arith.constant 0 : index
      %23 = vector.load %arg5[%c0_15, %c0_16, %c0_17] : memref<1x1x256xf32, #tpu.memory_space<vmem>>, vector<1x1x256xf32>
      %24 = vector.shape_cast %23 : vector<1x1x256xf32> to vector<1x256xf32>
      %cst_18 = arith.constant 1.000000e+00 : f32
      %25 = vector.broadcast %cst_18 : f32 to vector<24x256xf32>
      %26 = arith.addf %25, %16 : vector<24x256xf32>
      %27 = math.log %26 : vector<24x256xf32>
      %cst_19 = arith.constant dense<0.000000e+00> : vector<256xf32>
      %28 = vector.multi_reduction <add>, %27, %cst_19 [0] : vector<24x256xf32> to vector<256xf32>
      %29 = vector.shape_cast %28 : vector<256xf32> to vector<1x256xf32>
      %cst_20 = arith.constant 3.40136059E-4 : f32
      %30 = vector.broadcast %cst_20 : f32 to vector<1x256xf32>
      %31 = arith.mulf %29, %30 : vector<1x256xf32>
      %32 = arith.addf %24, %31 : vector<1x256xf32>
      %c0_21 = arith.constant 0 : index
      %c0_22 = arith.constant 0 : index
      %c0_23 = arith.constant 0 : index
      %33 = vector.load %arg5[%c0_21, %c0_22, %c0_23] : memref<1x1x256xf32, #tpu.memory_space<vmem>>, vector<1x1x256xf32>
      %34 = vector.shape_cast %33 : vector<1x1x256xf32> to vector<1x256xf32>
      %35 = vector.shape_cast %32 : vector<1x256xf32> to vector<1x1x256xf32>
      tpu.vector_store %arg5[%c0_21, %c0_22, %c0_23], %35 {strides = array<i32>} : memref<1x1x256xf32, #tpu.memory_space<vmem>>, vector<1x1x256xf32>,
    } else {
    }
    %c1_i32_13 = arith.constant 1 : i32
    %20 = arith.cmpi sge, %1, %c1_i32_13 : i32
    %21 = arith.extui %20 : i1 to i32
    %c0_i32_14 = arith.constant 0 : i32
    %22 = arith.cmpi ne, %21, %c0_i32_14 : i32
    scf.if %22 {
      %c0_15 = arith.constant 0 : index
      %c0_16 = arith.constant 0 : index
      %c0_17 = arith.constant 0 : index
      %23 = vector.load %arg5[%c0_15, %c0_16, %c0_17] : memref<1x1x256xf32, #tpu.memory_space<vmem>>, vector<1x1x256xf32>
      %24 = vector.shape_cast %23 : vector<1x1x256xf32> to vector<1x256xf32>
      %cst_18 = arith.constant dense<0.000000e+00> : vector<256xf32>
      %25 = vector.multi_reduction <add>, %16, %cst_18 [0] : vector<24x256xf32> to vector<256xf32>
      %26 = vector.shape_cast %25 : vector<256xf32> to vector<1x256xf32>
      %cst_19 = arith.constant 3.77928955E-4 : f32
      %27 = vector.broadcast %cst_19 : f32 to vector<1x256xf32>
      %28 = arith.mulf %26, %27 : vector<1x256xf32>
      %29 = arith.addf %24, %28 : vector<1x256xf32>
      %c0_20 = arith.constant 0 : index
      %c0_21 = arith.constant 0 : index
      %c0_22 = arith.constant 0 : index
      %30 = vector.load %arg5[%c0_20, %c0_21, %c0_22] : memref<1x1x256xf32, #tpu.memory_space<vmem>>, vector<1x1x256xf32>
      %31 = vector.shape_cast %30 : vector<1x1x256xf32> to vector<1x256xf32>
      %32 = vector.shape_cast %29 : vector<1x256xf32> to vector<1x1x256xf32>
      tpu.vector_store %arg5[%c0_20, %c0_21, %c0_22], %32 {strides = array<i32>} : memref<1x1x256xf32, #tpu.memory_space<vmem>>, vector<1x1x256xf32>,
    } else {
    }
    return
  }
  func.func @transform_0(%arg0: i32, %arg1: i32) -> (i32, i32) {
    %c0_i32 = arith.constant 0 : i32
    %c0_i32_0 = arith.constant 0 : i32
    %c0_i32_1 = arith.constant 0 : i32
    return %c0_i32, %c0_i32_0 : i32, i32
  }
  func.func @transform_1(%arg0: i32, %arg1: i32) -> (i32, i32) {
    %c1_i32 = arith.constant 1 : i32
    %0 = arith.muli %arg0, %c1_i32 : i32
    %1 = arith.addi %0, %arg1 : i32
    %c0_i32 = arith.constant 0 : i32
    %c0_i32_0 = arith.constant 0 : i32
    return %c0_i32, %1 : i32, i32
  }
  func.func @transform_2(%arg0: i32, %arg1: i32) -> (i32, i32) {
    %c1_i32 = arith.constant 1 : i32
    %0 = arith.muli %arg0, %c1_i32 : i32
    %1 = arith.addi %0, %arg1 : i32
    %c0_i32 = arith.constant 0 : i32
    %c0_i32_0 = arith.constant 0 : i32
    return %c0_i32, %1 : i32, i32
  }
  func.func @transform_3(%arg0: i32, %arg1: i32) -> (i32, i32, i32) {
    %c0_i32 = arith.constant 0 : i32
    %c0_i32_0 = arith.constant 0 : i32
    %c0_i32_1 = arith.constant 0 : i32
    return %arg0, %c0_i32, %c0_i32_0 : i32, i32, i32
  }
}

</mosaic_0001>

<llo_original>
// kernel: _hand_ord_loss.1
$region0: #{_hand_ord_loss.1}
  #allocation0 [shape = 'u32[]', space=smem, size = 0x4, offset = 0x4, fixed_abs, tag = 'smem constant byte address 0x4 - core index']
  #allocation1 [shape = 'u32[144,128]{1,0:T(1,128)}', space=vmem, size = 0x12000, scoped, tag = 'internal scratch']
  %s0 = inlined_call_operand.vmem [shape: f32[24,8], index: 0, kind: input, shape index: {}]
  %s1 = inlined_call_operand.vmem [shape: f32[8,512], index: 1, kind: input, shape index: {}]
  %s2 = inlined_call_operand.vmem [shape: f32[8,512], index: 2, kind: input, shape index: {}]
  %s3 = inlined_call_operand.vmem [shape: f32[2,1,256], index: 3, kind: output, shape index: {}]
  %s4 = sld [smem:[#allocation0]]
  $region57: #{_hand_ord_loss.1} parent=0
    _
  %s6 = ssub.s32 1, %s4
  %s7 = scalar_select 0, %s6, %s4
  loop: start=0, step=1, limit=4
  $region2: #{_hand_ord_loss.1} parent=0 // loop_pre_header
    _
  $region3: #{_hand_ord_loss.1} parent=0 // loop_header
    %s9 = sphi 0, %s13
    %p10 = scmp.ge.s32.totalorder %s9, 4
    %s16 = sphi 0, %s28
    %s17 = sphi 0, %s24
    %s18 = sphi 0, %s16
    %s19 = sphi 0, %s17
    %s20 = sphi 0, %s18
    %s21 = sphi 0, %s19
    %s29 = sphi 0, %s29
    %s31 = sphi 0, %s29
    %s32 = sphi 0, %s31
    %s46 = sphi 0, %s32
    %s54 = sphi 0, %s56
    %s57 = sphi 0, %s54
    %s58 = sphi 0, %s57
    %s74 = sphi 0, %s58
    %s82 = sphi 0, %s84
    %s85 = sphi 0, %s82
    %s86 = sphi 0, %s85
    %s102 = sphi 0, %s86
    %s108 = sphi 0, %s110
    %s111 = sphi 0, %s108
    %s112 = sphi 0, %s111
    %s128 = sphi 0, %s112
  $region4: #{_hand_ord_loss.1} parent=0 // loop_header_branch
    %12 = sbr.rel (%p10) target = $region8
  $region5: #{_hand_ord_loss.1} parent=0 // loop_body
    %s14 = ssub.s32 %s9, 1
    %s15 = ssub.s32 %s9, 2
    %s22 = sadd.s32 1, %s17
    %p23 = scmp.ge.s32.totalorder %s22, 1
    %s24 = scalar_select %p23, 0, %s22
    %s25 = sadd.s32 1, %s16
    %s26 = scalar_select %p23, %s25, %s16
    %p27 = scmp.ge.s32.totalorder %s26, 2
    %s28 = scalar_select %p27, 0, %s26
    %s30 = sadd.s32 %s29, 1
    %p33 = scmp.eq.s32.totalorder %s9, 1
    %p34 = scmp.ne.s32.totalorder %s29, %s31
    %p35 = scmp.eq.s32.totalorder %s9, 0
    %p36 = por %p34, %p35
    %p37 = scmp.ne.s32.totalorder %s29, %s31
    %p38 = scmp.eq.s32.totalorder %s14, 1
    %p39 = por %p37, %p38
    %p40 = scmp.ne.s32.totalorder %s31, %s32
    %p41 = scmp.eq.s32.totalorder %s14, 0
    %p42 = por %p40, %p41
    %p43 = scmp.ne.s32.totalorder %s31, %s32
    %p44 = scmp.eq.s32.totalorder %s15, 1
    %p45 = por %p43, %p44
    %p47 = scmp.ne.s32.totalorder %s32, %s46
    %p48 = scmp.eq.s32.totalorder %s15, 0
    %p49 = por %p47, %p48
    %s50 = sadd.s32 %s16, %s17
    %s51 = sadd.s32 %s28, %s24
    %s52 = ssub.s32 %s50, %s51
    %p53 = scmp.eq.s32.totalorder %s52, 0
    %s55 = sadd.s32 %s54, 1
    %s56 = scalar_select %p53, %s54, %s55
    %p59 = pneg %p53
    %p60 = scmp.eq.s32.totalorder %s9, 1
    %p61 = por %p59, %p60
    %p62 = scmp.ne.s32.totalorder %s54, %s57
    %p63 = scmp.eq.s32.totalorder %s9, 0
    %p64 = por %p62, %p63
    %p65 = scmp.ne.s32.totalorder %s54, %s57
    %p66 = scmp.eq.s32.totalorder %s14, 1
    %p67 = por %p65, %p66
    %p68 = scmp.ne.s32.totalorder %s57, %s58
    %p69 = scmp.eq.s32.totalorder %s14, 0
    %p70 = por %p68, %p69
    %p71 = scmp.ne.s32.totalorder %s57, %s58
    %p72 = scmp.eq.s32.totalorder %s15, 1
    %p73 = por %p71, %p72
    %p75 = scmp.ne.s32.totalorder %s58, %s74
    %p76 = scmp.eq.s32.totalorder %s15, 0
    %p77 = por %p75, %p76
    %s78 = sadd.s32 %s16, %s17
    %s79 = sadd.s32 %s28, %s24
    %s80 = ssub.s32 %s78, %s79
    %p81 = scmp.eq.s32.totalorder %s80, 0
    %s83 = sadd.s32 %s82, 1
    %s84 = scalar_select %p81, %s82, %s83
    %p87 = pneg %p81
    %p88 = scmp.eq.s32.totalorder %s9, 1
    %p89 = por %p87, %p88
    %p90 = scmp.ne.s32.totalorder %s82, %s85
    %p91 = scmp.eq.s32.totalorder %s9, 0
    %p92 = por %p90, %p91
    %p93 = scmp.ne.s32.totalorder %s82, %s85
    %p94 = scmp.eq.s32.totalorder %s14, 1
    %p95 = por %p93, %p94
    %p96 = scmp.ne.s32.totalorder %s85, %s86
    %p97 = scmp.eq.s32.totalorder %s14, 0
    %p98 = por %p96, %p97
    %p99 = scmp.ne.s32.totalorder %s85, %s86
    %p100 = scmp.eq.s32.totalorder %s15, 1
    %p101 = por %p99, %p100
    %p103 = scmp.ne.s32.totalorder %s86, %s102
    %p104 = scmp.eq.s32.totalorder %s15, 0
    %p105 = por %p103, %p104
    %s106 = ssub.s32 %s16, %s28
    %p107 = scmp.eq.s32.totalorder %s106, 0
    %s109 = sadd.s32 %s108, 1
    %s110 = scalar_select %p107, %s108, %s109
    %p113 = pneg %p107
    %p114 = scmp.eq.s32.totalorder %s9, 1
    %p115 = por %p113, %p114
    %p116 = scmp.ne.s32.totalorder %s108, %s111
    %p117 = scmp.eq.s32.totalorder %s9, 0
    %p118 = por %p116, %p117
    %p119 = scmp.ne.s32.totalorder %s108, %s111
    %p120 = scmp.eq.s32.totalorder %s14, 1
    %p121 = por %p119, %p120
    %p122 = scmp.ne.s32.totalorder %s111, %s112
    %p123 = scmp.eq.s32.totalorder %s14, 0
    %p124 = por %p122, %p123
    %p125 = scmp.ne.s32.totalorder %s111, %s112
    %p126 = scmp.eq.s32.totalorder %s15, 1
    %p127 = por %p125, %p126
    %p129 = scmp.ne.s32.totalorder %s112, %s128
    %p130 = scmp.eq.s32.totalorder %s15, 0
    %p131 = por %p129, %p130
    %p132 = scmp.le.s32.totalorder 1, %s9
    %p133 = scmp.lt.s32.totalorder %s9, 3
    %p134 = pnand %p132, %p133
    %p135 = pneg %p134
    // Predicated region
    $region9: #{_hand_ord_loss.1} parent=5 // pred_check
      _
    $region10: #{_hand_ord_loss.1} parent=5 // pred_check_branch
      %137 = sbr.rel (%p134) target = $region12
    $region11: #{_hand_ord_loss.1} parent=5 // pred_region
      %s138 = ssub.s32 %s9, 1
      // Predicated region
      $region13: #{_hand_ord_loss.1} parent=11 // pred_check
        %p139 = pneg %p42
      $region14: #{_hand_ord_loss.1} parent=11 // pred_check_branch
        %141 = sbr.rel (%p139) target = $region16
      $region15: #{_hand_ord_loss.1} parent=11 // pred_region
        _
      $region16: #{_hand_ord_loss.1} parent=11 // pred_fallthru
        _
    $region12: #{_hand_ord_loss.1} parent=5 // pred_fallthru
      _
    %p142 = scmp.lt.s32.totalorder %s9, 2
    // Predicated region
    $region17: #{_hand_ord_loss.1} parent=5 // pred_check
      %p143 = pneg %p142
    $region18: #{_hand_ord_loss.1} parent=5 // pred_check_branch
      %145 = sbr.rel (%p143) target = $region20
    $region19: #{_hand_ord_loss.1} parent=5 // pred_region
      // Predicated region
      $region21: #{_hand_ord_loss.1} parent=19 // pred_check
        %p146 = pneg %p64
      $region22: #{_hand_ord_loss.1} parent=19 // pred_check_branch
        %148 = sbr.rel (%p146) target = $region24
      $region23: #{_hand_ord_loss.1} parent=19 // pred_region
        %s149 = sadd.s32 %s16, %s17
        %s150 = smul.u32 2, %s149
        %p151 = scmp.lt.s32.totalorder %s150, 3
        %s152 = scalar_select %p151, %s150, 3
        %s153 = smul.addr %s152, 8
        %s154 = scalar_lea.vmem %s1, %s153
        %s155 = sadd.s32 %s16, %s17
        %s156 = smul.u32 2, %s155
      $region24: #{_hand_ord_loss.1} parent=19 // pred_fallthru
        _
      // Predicated region
      $region25: #{_hand_ord_loss.1} parent=19 // pred_check
        %p157 = pneg %p92
      $region26: #{_hand_ord_loss.1} parent=19 // pred_check_branch
        %159 = sbr.rel (%p157) target = $region28
      $region27: #{_hand_ord_loss.1} parent=19 // pred_region
        %s160 = sadd.s32 %s16, %s17
        %s161 = smul.u32 2, %s160
        %p162 = scmp.lt.s32.totalorder %s161, 3
        %s163 = scalar_select %p162, %s161, 3
        %s164 = smul.addr %s163, 8
        %s165 = scalar_lea.vmem %s2, %s164
        %s166 = sadd.s32 %s16, %s17
        %s167 = smul.u32 2, %s166
      $region28: #{_hand_ord_loss.1} parent=19 // pred_fallthru
        _
    $region20: #{_hand_ord_loss.1} parent=5 // pred_fallthru
      _
    %p168 = scmp.le.s32.totalorder 1, %s9
    %p169 = scmp.lt.s32.totalorder %s9, 3
    %p170 = pnand %p168, %p169
    %p171 = pneg %p170
    // Predicated region
    $region29: #{_hand_ord_loss.1} parent=5 // pred_check
      _
    $region30: #{_hand_ord_loss.1} parent=5 // pred_check_branch
      %173 = sbr.rel (%p170) target = $region32
    $region31: #{_hand_ord_loss.1} parent=5 // pred_region
      %s174 = ssub.s32 %s9, 1
      %p175 = pneg %p42
      %p176 = pneg %p39
      %s177 = sadd.s32 %s18, %s19
      %s178 = smul.u32 2, %s177
      %p179 = scmp.lt.s32.totalorder %s178, 3
      %s180 = scalar_select %p179, %s178, 3
      %s181 = smul.addr %s180, 8
      %s182 = scalar_lea.vmem %s1, %s181
      %p183 = pneg %p70
      %p184 = pneg %p67
      %s185 = sadd.s32 %s18, %s19
      %s186 = smul.u32 2, %s185
      %p187 = scmp.lt.s32.totalorder %s186, 3
      %s188 = scalar_select %p187, %s186, 3
      %s189 = smul.addr %s188, 8
      %s190 = scalar_lea.vmem %s2, %s189
      %p191 = pneg %p98
      %p192 = pneg %p95
      %p193 = pneg %p124
      %p194 = pneg %p121
      %p195 = scmp.lt.s32.totalorder %s18, 1
      %s196 = scalar_select %p195, %s18, 1
      %s197 = smul.addr %s196, 2
      %s198 = scalar_lea.vmem %s3, %s197
      %s199 = sadd.s32 %s18, %s19
      %s200 = smul.u32 2, %s199
      %p201 = scmp.lt.s32.totalorder %s200, 3
      %s202 = scalar_select %p201, %s200, 3
      %s203 = smul.addr %s202, 8
      %s204 = scalar_lea.vmem %s1, %s203
      %s205 = sadd.s32 %s18, %s19
      %s206 = smul.u32 2, %s205
      %s207 = sadd.s32 %s18, %s19
      %s208 = smul.u32 2, %s207
      %p209 = scmp.lt.s32.totalorder %s208, 3
      %s210 = scalar_select %p209, %s208, 3
      %s211 = smul.addr %s210, 8
      %s212 = scalar_lea.vmem %s2, %s211
      %s213 = sadd.s32 %s18, %s19
      %s214 = smul.u32 2, %s213
      %p215 = scmp.lt.s32.totalorder %s18, 1
      %s216 = scalar_select %p215, %s18, 1
      %s217 = smul.addr %s216, 2
      %s218 = scalar_lea.vmem %s3, %s217
      %s219 = sadd.s32 %s18, %s19
      %p220 = scmp.eq.s32.totalorder %s19, 0
      // Predicated region
      $region33: #{_hand_ord_loss.1} parent=31 // pred_check
        %p221 = pneg %p220
      $region34: #{_hand_ord_loss.1} parent=31 // pred_check_branch
        %223 = sbr.rel (%p221) target = $region36
      $region35: #{_hand_ord_loss.1} parent=31 // pred_region
        %v224 = vlaneseq
        %vm225 = vcmp.ge.s32.totalorder %v224, 0
        %vm226 = vcmp.lt.s32.totalorder %v224, 256
        %vm227 = vmand %vm225, %vm226
        %228 = vst.msk [vmem:[%s218] sm:$0x3] %vm227, 0.0
      $region36: #{_hand_ord_loss.1} parent=31 // pred_fallthru
        _
      %v229 = vld [vmem:[%s0] sm:$0xff]
      %v230 = vld [vmem:[%s0 + $0x8] sm:$0xff]
      %v231 = vld [vmem:[%s0 + $0x10] sm:$0xff]
      %v232 = vld [vmem:[%s204] sm:$0xff]
      %v233 = vld [vmem:[%s204 + $0x8] sm:$0xff]
      %vm234 = vcmask 64512
      %v236 = vsel %vm234, %v229, 0
      %v239 = vsel %vm234, %v230, 0
      %v242 = vsel %vm234, %v231, 0
      %244 = vmatprep.subr.mxu0 %v233
      %245 = vmatpush1.msra.mxu0 %v232
      %246 = vmatprep.subr.mxu0 0.0
      %247 = vmatpush1.msra.mxu0 0.0
      %248 = vmatprep.subr.mxu0 0.0
      %249 = vmatpush1.msra.mxu0 0.0
      %250 = vmatprep.subr.mxu0 0.0
      %251 = vmatpush1.msra.mxu0 0.0
      %252 = vmatprep.subr.mxu0 0.0
      %253 = vmatpush1.msra.mxu0 0.0
      %254 = vmatprep.subr.mxu0 0.0
      %255 = vmatpush1.msra.mxu0 0.0
      %256 = vmatprep.subr.mxu0 0.0
      %257 = vmatpush1.msra.mxu0 0.0
      %258 = vmatprep.subr.mxu0 0.0
      %259 = vmatpush1.msra.mxu0 0.0
      %260 = vmatprep.subr.mxu0 0.0
      %261 = vmatpush1.msra.mxu0 0.0
      %262 = vmatprep.subr.mxu0 0.0
      %263 = vmatpush1.msra.mxu0 0.0
      %264 = vmatprep.subr.mxu0 0.0
      %265 = vmatpush1.msra.mxu0 0.0
      %266 = vmatprep.subr.mxu0 0.0
      %267 = vmatpush1.msra.mxu0 0.0
      %268 = vmatprep.subr.mxu0 0.0
      %269 = vmatpush1.msra.mxu0 0.0
      %270 = vmatprep.subr.mxu0 0.0
      %271 = vmatpush1.msra.mxu0 0.0
      %272 = vmatprep.subr.mxu0 0.0
      %273 = vmatpush1.msra.mxu0 0.0
      %274 = vmatprep.subr.mxu0 0.0
      %275 = vmatpush1.msra.mxu0 0.0
      %276 = vmatprep.subr.mxu0 0.0
      %277 = vmatpush1.msra.mxu0 0.0
      %278 = vmatprep.subr.mxu0 0.0
      %279 = vmatpush1.msra.mxu0 0.0
      %280 = vmatprep.subr.mxu0 0.0
      %281 = vmatpush1.msra.mxu0 0.0
      %282 = vmatprep.subr.mxu0 0.0
      %283 = vmatpush1.msra.mxu0 0.0
      %284 = vmatprep.subr.mxu0 0.0
      %285 = vmatpush1.msra.mxu0 0.0
      %286 = vmatprep.subr.mxu0 0.0
      %287 = vmatpush1.msra.mxu0 0.0
      %288 = vmatprep.subr.mxu0 0.0
      %289 = vmatpush1.msra.mxu0 0.0
      %290 = vmatprep.subr.mxu0 0.0
      %291 = vmatpush1.msra.mxu0 0.0
      %292 = vmatprep.subr.mxu0 0.0
      %293 = vmatpush1.msra.mxu0 0.0
      %294 = vmatprep.subr.mxu0 0.0
      %295 = vmatpush1.msra.mxu0 0.0
      %296 = vmatprep.subr.mxu0 0.0
      %297 = vmatpush1.msra.mxu0 0.0
      %298 = vmatprep.subr.mxu0 0.0
      %299 = vmatpush1.msra.mxu0 0.0
      %300 = vmatprep.subr.mxu0 0.0
      %301 = vmatpush1.msra.mxu0 0.0
      %302 = vmatprep.subr.mxu0 0.0
      %303 = vmatpush1.msra.mxu0 0.0
      %304 = vmatprep.subr.mxu0 0.0
      %305 = vmatpush1.msra.mxu0 0.0
      %306 = vmatprep.subr.mxu0 0.0
      %307 = vmatpush1.msra.mxu0 0.0
      %308 = vmatprep.mubr.f32.mxu0 0.0
      %309 = vmatmul.mubr.f32.gmra.mrb[0].mxu0 %v236
      %v310 = vpop.f32.mrb[0].mxu0
      %v311 = vadd.f32 0.0, %v310
      %v312 = vpop.f32.mrb[0].mxu0
      %v313 = vadd.f32 0.0, %v312
      %314 = vmatprep.mubr.f32.mxu0 0.0
      %315 = vmatmul.mubr.f32.gmra.mrb[0].mxu0 %v239
      %v316 = vpop.f32.mrb[0].mxu0
      %v317 = vadd.f32 0.0, %v316
      %v318 = vpop.f32.mrb[0].mxu0
      %v319 = vadd.f32 0.0, %v318
      %320 = vmatprep.mubr.f32.mxu0 0.0
      %321 = vmatmul.mubr.f32.gmra.mrb[0].mxu0 %v242
      %v322 = vpop.f32.mrb[0].mxu0
      %v323 = vadd.f32 0.0, %v322
      %v324 = vpop.f32.mrb[0].mxu0
      %v325 = vadd.f32 0.0, %v324
      %326 = vdwg.mxu0
      %v327 = vld [vmem:[%s212] sm:$0xff]
      %v328 = vld [vmem:[%s212 + $0x8] sm:$0xff]
      %329 = vmatprep.subr.mxu0 %v328
      %330 = vmatpush1.msra.mxu0 %v327
      %331 = vmatprep.subr.mxu0 0.0
      %332 = vmatpush1.msra.mxu0 0.0
      %333 = vmatprep.subr.mxu0 0.0
      %334 = vmatpush1.msra.mxu0 0.0
      %335 = vmatprep.subr.mxu0 0.0
      %336 = vmatpush1.msra.mxu0 0.0
      %337 = vmatprep.subr.mxu0 0.0
      %338 = vmatpush1.msra.mxu0 0.0
      %339 = vmatprep.subr.mxu0 0.0
      %340 = vmatpush1.msra.mxu0 0.0
      %341 = vmatprep.subr.mxu0 0.0
      %342 = vmatpush1.msra.mxu0 0.0
      %343 = vmatprep.subr.mxu0 0.0
      %344 = vmatpush1.msra.mxu0 0.0
      %345 = vmatprep.subr.mxu0 0.0
      %346 = vmatpush1.msra.mxu0 0.0
      %347 = vmatprep.subr.mxu0 0.0
      %348 = vmatpush1.msra.mxu0 0.0
      %349 = vmatprep.subr.mxu0 0.0
      %350 = vmatpush1.msra.mxu0 0.0
      %351 = vmatprep.subr.mxu0 0.0
      %352 = vmatpush1.msra.mxu0 0.0
      %353 = vmatprep.subr.mxu0 0.0
      %354 = vmatpush1.msra.mxu0 0.0
      %355 = vmatprep.subr.mxu0 0.0
      %356 = vmatpush1.msra.mxu0 0.0
      %357 = vmatprep.subr.mxu0 0.0
      %358 = vmatpush1.msra.mxu0 0.0
      %359 = vmatprep.subr.mxu0 0.0
      %360 = vmatpush1.msra.mxu0 0.0
      %361 = vmatprep.subr.mxu0 0.0
      %362 = vmatpush1.msra.mxu0 0.0
      %363 = vmatprep.subr.mxu0 0.0
      %364 = vmatpush1.msra.mxu0 0.0
      %365 = vmatprep.subr.mxu0 0.0
      %366 = vmatpush1.msra.mxu0 0.0
      %367 = vmatprep.subr.mxu0 0.0
      %368 = vmatpush1.msra.mxu0 0.0
      %369 = vmatprep.subr.mxu0 0.0
      %370 = vmatpush1.msra.mxu0 0.0
      %371 = vmatprep.subr.mxu0 0.0
      %372 = vmatpush1.msra.mxu0 0.0
      %373 = vmatprep.subr.mxu0 0.0
      %374 = vmatpush1.msra.mxu0 0.0
      %375 = vmatprep.subr.mxu0 0.0
      %376 = vmatpush1.msra.mxu0 0.0
      %377 = vmatprep.subr.mxu0 0.0
      %378 = vmatpush1.msra.mxu0 0.0
      %379 = vmatprep.subr.mxu0 0.0
      %380 = vmatpush1.msra.mxu0 0.0
      %381 = vmatprep.subr.mxu0 0.0
      %382 = vmatpush1.msra.mxu0 0.0
      %383 = vmatprep.subr.mxu0 0.0
      %384 = vmatpush1.msra.mxu0 0.0
      %385 = vmatprep.subr.mxu0 0.0
      %386 = vmatpush1.msra.mxu0 0.0
      %387 = vmatprep.subr.mxu0 0.0
      %388 = vmatpush1.msra.mxu0 0.0
      %389 = vmatprep.subr.mxu0 0.0
      %390 = vmatpush1.msra.mxu0 0.0
      %391 = vmatprep.subr.mxu0 0.0
      %392 = vmatpush1.msra.mxu0 0.0
      %393 = vmatprep.mubr.f32.mxu0 0.0
      %394 = vmatmul.mubr.f32.gmra.mrb[0].mxu0 %v236
      %v395 = vpop.f32.mrb[0].mxu0
      %v396 = vadd.f32 0.0, %v395
      %v397 = vpop.f32.mrb[0].mxu0
      %v398 = vadd.f32 0.0, %v397
      %399 = vmatprep.mubr.f32.mxu0 0.0
      %400 = vmatmul.mubr.f32.gmra.mrb[0].mxu0 %v239
      %v401 = vpop.f32.mrb[0].mxu0
      %v402 = vadd.f32 0.0, %v401
      %v403 = vpop.f32.mrb[0].mxu0
      %v404 = vadd.f32 0.0, %v403
      %405 = vmatprep.mubr.f32.mxu0 0.0
      %406 = vmatmul.mubr.f32.gmra.mrb[0].mxu0 %v242
      %v407 = vpop.f32.mrb[0].mxu0
      %v408 = vadd.f32 0.0, %v407
      %v409 = vpop.f32.mrb[0].mxu0
      %v410 = vadd.f32 0.0, %v409
      %411 = vdwg.mxu0
      %v412 = vmul.f32 %v396, %v311
      %v413 = vmul.f32 %v398, %v313
      %v414 = vmul.f32 %v402, %v317
      %v415 = vmul.f32 %v404, %v319
      %v416 = vmul.f32 %v408, %v323
      %v417 = vmul.f32 %v410, %v325
      %vm418 = vcmp.lt.f32.partialorder %v412, 0.0
      %vm419 = vcmp.lt.f32.partialorder %v413, 0.0
      %vm420 = vcmp.lt.f32.partialorder %v414, 0.0
      %vm421 = vcmp.lt.f32.partialorder %v415, 0.0
      %vm422 = vcmp.lt.f32.partialorder %v416, 0.0
      %vm423 = vcmp.lt.f32.partialorder %v417, 0.0
      %v424 = vand.u32 2147483647, %v311
      %v425 = vand.u32 2147483647, %v313
      %v426 = vand.u32 2147483647, %v317
      %v427 = vand.u32 2147483647, %v319
      %v428 = vand.u32 2147483647, %v323
      %v429 = vand.u32 2147483647, %v325
      %v430 = vsel %vm418, %v424, 0.0
      %v431 = vsel %vm419, %v425, 0.0
      %v432 = vsel %vm420, %v426, 0.0
      %v433 = vsel %vm421, %v427, 0.0
      %v434 = vsel %vm422, %v428, 0.0
      %v435 = vsel %vm423, %v429, 0.0
      %p436 = scmp.lt.s32.totalorder %s219, 1
      // Predicated region
      $region37: #{_hand_ord_loss.1} parent=31 // pred_check
        %p437 = pneg %p436
      $region38: #{_hand_ord_loss.1} parent=31 // pred_check_branch
        %439 = sbr.rel (%p437) target = $region40
      $region39: #{_hand_ord_loss.1} parent=31 // pred_region
        %v440 = vld [vmem:[%s218] sm:$0x3]
        %v441 = vadd.f32 %v430, 1.0
        %v442 = vadd.f32 %v431, 1.0
        %v443 = vadd.f32 %v432, 1.0
        %v444 = vadd.f32 %v433, 1.0
        %v445 = vadd.f32 %v434, 1.0
        %v446 = vadd.f32 %v435, 1.0
        %v447 = vlog2.pop %v441
        %v448 = vmul.f32 %v447, 0.6931472
        %v449 = vlog2.pop %v442
        %v450 = vmul.f32 %v449, 0.6931472
        %v451 = vlog2.pop %v443
        %v452 = vmul.f32 %v451, 0.6931472
        %v453 = vlog2.pop %v444
        %v454 = vmul.f32 %v453, 0.6931472
        %v455 = vlog2.pop %v445
        %v456 = vmul.f32 %v455, 0.6931472
        %v457 = vlog2.pop %v446
        %v458 = vmul.f32 %v457, 0.6931472
        %v459 = vadd.f32 %v448, %v452
        %v460 = vadd.f32 %v459, %v456
        %v461 = vrot.slane %v460, 4
        %v462 = vadd.f32 %v460, %v461
        %v463 = vrot.slane %v462, 2
        %v464 = vadd.f32 %v462, %v463
        %v465 = vrot.slane %v464, 1
        %v466 = vadd.f32 %v464, %v465
        %v467 = vadd.f32 %v450, %v454
        %v468 = vadd.f32 %v467, %v458
        %v469 = vrot.slane %v468, 4
        %v470 = vadd.f32 %v468, %v469
        %v471 = vrot.slane %v470, 2
        %v472 = vadd.f32 %v470, %v471
        %v473 = vrot.slane %v472, 1
        %v474 = vadd.f32 %v472, %v473
        %v475 = vmul.f32 %v466, 0.00034013606
        %v476 = vmul.f32 %v474, 0.00034013606
        %v479 = vcombine.low %v475, %v476
        %v481 = vunpack.c.l.s4 1966171168
        %v482 = vunpack.c.0.s8 %v481
        %v483 = vlaneseq
        %v484 = vshrl.u32 %v483, 7
        %v485 = vsub.s32 %v482, %v484
        %v486 = vrot.slane %v479, %v485
        %v488 = vunpack.c.l.s4 1966171168
        %v489 = vunpack.c.0.s8 %v488
        %v490 = vlaneseq
        %v491 = vshrl.u32 %v490, 7
        %v492 = vsub.s32 %v489, %v491
        %v493 = vrot.slane %v486, %v492
        %v495 = vadd.f32 %v440, %v493
        %v496 = vlaneseq
        %vm497 = vcmp.ge.s32.totalorder %v496, 0
        %vm498 = vcmp.lt.s32.totalorder %v496, 256
        %vm499 = vmand %vm497, %vm498
        %500 = vst.msk [vmem:[%s218] sm:$0x3] %vm499, %v495
      $region40: #{_hand_ord_loss.1} parent=31 // pred_fallthru
        _
      %p501 = scmp.ge.s32.totalorder %s219, 1
      // Predicated region
      $region41: #{_hand_ord_loss.1} parent=31 // pred_check
        %p502 = pneg %p501
      $region42: #{_hand_ord_loss.1} parent=31 // pred_check_branch
        %504 = sbr.rel (%p502) target = $region44
      $region43: #{_hand_ord_loss.1} parent=31 // pred_region
        %v505 = vld [vmem:[%s218] sm:$0x3]
        %v506 = vadd.f32 %v430, %v432
        %v507 = vadd.f32 %v506, %v434
        %v508 = vrot.slane %v507, 4
        %v509 = vadd.f32 %v507, %v508
        %v510 = vrot.slane %v509, 2
        %v511 = vadd.f32 %v509, %v510
        %v512 = vrot.slane %v511, 1
        %v513 = vadd.f32 %v511, %v512
        %v514 = vadd.f32 %v431, %v433
        %v515 = vadd.f32 %v514, %v435
        %v516 = vrot.slane %v515, 4
        %v517 = vadd.f32 %v515, %v516
        %v518 = vrot.slane %v517, 2
        %v519 = vadd.f32 %v517, %v518
        %v520 = vrot.slane %v519, 1
        %v521 = vadd.f32 %v519, %v520
        %v522 = vmul.f32 %v513, 0.00037792895
        %v523 = vmul.f32 %v521, 0.00037792895
        %v526 = vcombine.low %v522, %v523
        %v528 = vunpack.c.l.s4 1966171168
        %v529 = vunpack.c.0.s8 %v528
        %v530 = vlaneseq
        %v531 = vshrl.u32 %v530, 7
        %v532 = vsub.s32 %v529, %v531
        %v533 = vrot.slane %v526, %v532
        %v535 = vunpack.c.l.s4 1966171168
        %v536 = vunpack.c.0.s8 %v535
        %v537 = vlaneseq
        %v538 = vshrl.u32 %v537, 7
        %v539 = vsub.s32 %v536, %v538
        %v540 = vrot.slane %v533, %v539
        %v542 = vadd.f32 %v505, %v540
        %v543 = vlaneseq
        %vm544 = vcmp.ge.s32.totalorder %v543, 0
        %vm545 = vcmp.lt.s32.totalorder %v543, 256
        %vm546 = vmand %vm544, %vm545
        %547 = vst.msk [vmem:[%s218] sm:$0x3] %vm546, %v542
      $region44: #{_hand_ord_loss.1} parent=31 // pred_fallthru
        _
      %p548 = scmp.lt.s32.totalorder %s18, 1
      %s549 = scalar_select %p548, %s18, 1
      %s550 = smul.addr %s549, 2
      %s551 = scalar_lea.vmem %s3, %s550
      // Predicated region
      $region45: #{_hand_ord_loss.1} parent=31 // pred_check
        %p552 = pneg %p121
      $region46: #{_hand_ord_loss.1} parent=31 // pred_check_branch
        %554 = sbr.rel (%p552) target = $region48
      $region47: #{_hand_ord_loss.1} parent=31 // pred_region
        _
      $region48: #{_hand_ord_loss.1} parent=31 // pred_fallthru
        _
    $region32: #{_hand_ord_loss.1} parent=5 // pred_fallthru
      _
    %p555 = scmp.le.s32.totalorder 2, %s9
    // Predicated region
    $region49: #{_hand_ord_loss.1} parent=5 // pred_check
      %p556 = pneg %p555
    $region50: #{_hand_ord_loss.1} parent=5 // pred_check_branch
      %558 = sbr.rel (%p556) target = $region52
    $region51: #{_hand_ord_loss.1} parent=5 // pred_region
      %s559 = ssub.s32 %s9, 2
      // Predicated region
      $region53: #{_hand_ord_loss.1} parent=51 // pred_check
        %p560 = pneg %p127
      $region54: #{_hand_ord_loss.1} parent=51 // pred_check_branch
        %562 = sbr.rel (%p560) target = $region56
      $region55: #{_hand_ord_loss.1} parent=51 // pred_region
        %p563 = scmp.lt.s32.totalorder %s20, 1
        %s564 = scalar_select %p563, %s20, 1
        %s565 = smul.addr %s564, 2
        %s566 = scalar_lea.vmem %s3, %s565
      $region56: #{_hand_ord_loss.1} parent=51 // pred_fallthru
        _
    $region52: #{_hand_ord_loss.1} parent=5 // pred_fallthru
      _
  $region6: #{_hand_ord_loss.1} parent=0 // loop_footer
    %s13 = sadd.s32 1, %s9
  $region7: #{_hand_ord_loss.1} parent=0 // loop_footer_branch
    %8 = sbr.rel target = $region3
  $region8: #{_hand_ord_loss.1} parent=0 // loop_exit
    _

</llo_original>
